<compile_context>
chip_gen: v5e
topology: v5e:2x2
jax: 0.10.0
libtpu: 0.0.40
codegen_flags: <defaults>
</compile_context>

<pallas_src>
import jax
import jax.numpy as jnp
from jax.experimental import pallas as pl
from jax.experimental.pallas import tpu as pltpu


def linear_kernel(x_ref, w_ref, b_ref, o_ref):
    # x_ref: (b_tile, K) VMEM, w_ref: (1, K) VMEM, b_ref: (1, 1) SMEM scalar.
    # VPU multiply (broadcast the (1, K) weight row over the batch sublanes),
    # then one cross-lane reduce on the XLU; MXU stays out of the picture.
    prod = x_ref[...] * w_ref[...]                      # (b_tile, K)
    y = jnp.sum(prod, axis=-1, keepdims=True)           # (b_tile, 1)
    o_ref[...] = y + b_ref[0, 0]                        # scalar bias from SMEM


def simple_nn_forward(x, weight, bias, *, b_tile=2048):
    """Forward of nn.Linear(10, 1).

    x:      (B, 10)  float32
    weight: (1, 10)  float32   (PyTorch (out_features, in_features) layout)
    bias:   (1,)     float32
    returns (B, 1)   float32
    """
    B, K = x.shape
    N = weight.shape[0]  # out_features == 1

    if B <= b_tile:
        # Single full-array block; full-extent dims are exempt from the
        # (8, 128) block-shape rule, so any B works here.
        b_tile = B
        grid = (1,)
    else:
        # Tiled path: keep the sublane dim a multiple of 8 and let Pallas pad
        # the (independent-row) ragged last block.
        b_tile = max(8, (b_tile // 8) * 8)
        grid = (pl.cdiv(B, b_tile),)

    return pl.pallas_call(
        linear_kernel,
        out_shape=jax.ShapeDtypeStruct((B, N), jnp.float32),
        grid=grid,
        in_specs=[
            # x: tile the batch axis; each grid step gets a fresh (b_tile, K)
            # block, double-buffered by the BlockSpec pipeline.
            pl.BlockSpec((b_tile, K), lambda i: (i, 0)),
            # weight row: same tiny (1, K) block every step -> resident in VMEM.
            pl.BlockSpec((N, K), lambda i: (0, 0)),
            # bias: a single float -> SMEM, read as a scalar inside the kernel.
            pl.BlockSpec(memory_space=pltpu.MemorySpace.SMEM),
        ],
        out_specs=pl.BlockSpec((b_tile, N), lambda i: (i, 0)),
        compiler_params=pltpu.CompilerParams(
            # Batch blocks are independent -> "parallel" lets v7x shard the
            # grid across its two TensorCores; harmless on v5e/v6e.
            dimension_semantics=("parallel",),
        ),
    )(x, weight, bias.reshape(1, 1))


if __name__ == "__main__":
    key = jax.random.PRNGKey(0)
    k_x, k_w, k_b, k_x2, k_x3 = jax.random.split(key, 5)

    B, IN, OUT = 8, 10, 1

    # Deterministic "PyTorch-like" init: U(-1/sqrt(in), 1/sqrt(in)) in
    # PyTorch's native layouts: weight (OUT, IN), bias (OUT,).
    bound = 1.0 / (IN ** 0.5)
    w = jax.random.uniform(k_w, (OUT, IN), jnp.float32, -bound, bound)
    b = jax.random.uniform(k_b, (OUT,), jnp.float32, -bound, bound)

    # 1) Small-shape run (single full-array block).
    x = jax.random.normal(k_x, (B, IN), jnp.float32)
    out = simple_nn_forward(x, w, b)
    jax.block_until_ready(out)
    ref = x @ w.T + b
    assert out.shape == (B, OUT)
    assert jnp.allclose(out, ref, atol=1e-5, rtol=1e-5)

    # 2) Batch-tiled, multi-block pipelined path (2 x 2048 rows).
    B2 = 4096
    x2 = jax.random.normal(k_x2, (B2, IN), jnp.float32)
    out2 = simple_nn_forward(x2, w, b)
    jax.block_until_ready(out2)
    ref2 = x2 @ w.T + b
    assert out2.shape == (B2, OUT)
    assert jnp.allclose(out2, ref2, atol=1e-5, rtol=1e-5)

    # 3) Ragged batch (last block padded by Pallas; padded rows are masked).
    B3 = 1000
    x3 = jax.random.normal(k_x3, (B3, IN), jnp.float32)
    out3 = simple_nn_forward(x3, w, b, b_tile=256)
    jax.block_until_ready(out3)
    ref3 = x3 @ w.T + b
    assert out3.shape == (B3, OUT)
    assert jnp.allclose(out3, ref3, atol=1e-5, rtol=1e-5)

    print("KERNEL_OK")
</pallas_src>

<mosaic_0001>
module attributes {stable_mosaic.version = 11 : i64} {
  func.func @linear_kernel(%arg0: i32, %arg1: memref<8x10xf32, #tpu.memory_space<vmem>>, %arg2: memref<1x10xf32, #tpu.memory_space<vmem>>, %arg3: memref<1x1xf32, #tpu.memory_space<smem>>, %arg4: memref<8x1xf32, #tpu.memory_space<vmem>>) attributes {dimension_semantics = [#tpu.dimension_semantics<parallel>], iteration_bounds = array<i64: 1>, scalar_prefetch = 0 : i64, scratch_operands = 0 : i64, tpu.core_type = #tpu.core_type<tc>, window_params = [{transform_indices = @transform_0, window_bounds = array<i64: 8, 10>}, {pipeline_mode = #tpu.pipeline_mode<synchronous>, transform_indices = @transform_1, window_bounds = array<i64: 1, 10>}, {transform_indices = @transform_2, window_bounds = array<i64: 1, 1>}, {transform_indices = @transform_3, window_bounds = array<i64: 8, 1>}]} {
    %c0 = arith.constant 0 : index
    %c0_0 = arith.constant 0 : index
    %0 = vector.load %arg1[%c0, %c0_0] : memref<8x10xf32, #tpu.memory_space<vmem>>, vector<8x10xf32>
    %c0_1 = arith.constant 0 : index
    %c0_2 = arith.constant 0 : index
    %1 = vector.load %arg2[%c0_1, %c0_2] : memref<1x10xf32, #tpu.memory_space<vmem>>, vector<1x10xf32>
    %2 = vector.broadcast %1 : vector<1x10xf32> to vector<8x10xf32>
    %3 = arith.mulf %0, %2 : vector<8x10xf32>
    %cst = arith.constant dense<0.000000e+00> : vector<8xf32>
    %4 = vector.multi_reduction <add>, %3, %cst [1] : vector<8x10xf32> to vector<8xf32>
    %5 = vector.shape_cast %4 : vector<8xf32> to vector<8x1xf32>
    %c0_3 = arith.constant 0 : index
    %c0_4 = arith.constant 0 : index
    %6 = memref.load %arg3[%c0_3, %c0_4] : memref<1x1xf32, #tpu.memory_space<smem>>
    %7 = vector.broadcast %6 : f32 to vector<8x1xf32>
    %8 = arith.addf %5, %7 : vector<8x1xf32>
    %c0_5 = arith.constant 0 : index
    %c0_6 = arith.constant 0 : index
    %9 = vector.load %arg4[%c0_5, %c0_6] : memref<8x1xf32, #tpu.memory_space<vmem>>, vector<8x1xf32>
    tpu.vector_store %arg4[%c0_5, %c0_6], %8 {strides = array<i32>} : memref<8x1xf32, #tpu.memory_space<vmem>>, vector<8x1xf32>,
    return
  }
  func.func @transform_0(%arg0: i32) -> (i32, i32) {
    %c0_i32 = arith.constant 0 : i32
    %c0_i32_0 = arith.constant 0 : i32
    return %arg0, %c0_i32 : i32, i32
  }
  func.func @transform_1(%arg0: i32) -> (i32, i32) {
    %c0_i32 = arith.constant 0 : i32
    %c0_i32_0 = arith.constant 0 : i32
    %c0_i32_1 = arith.constant 0 : i32
    return %c0_i32, %c0_i32_0 : i32, i32
  }
  func.func @transform_2(%arg0: i32) -> (i32, i32) {
    %c0_i32 = arith.constant 0 : i32
    %c0_i32_0 = arith.constant 0 : i32
    %c0_i32_1 = arith.constant 0 : i32
    return %c0_i32, %c0_i32_0 : i32, i32
  }
  func.func @transform_3(%arg0: i32) -> (i32, i32) {
    %c0_i32 = arith.constant 0 : i32
    %c0_i32_0 = arith.constant 0 : i32
    return %arg0, %c0_i32 : i32, i32
  }
}

</mosaic_0001>

<llo_original>
// kernel: tpu_custom_call.1
$region0: #{tpu_custom_call.1}
  #allocation0 [shape = 'u32[]', space=smem, size = 0x4, offset = 0x4, fixed_abs, tag = 'smem constant byte address 0x4 - core index']
  #allocation1 [shape = 'u32[72,128]{1,0:T(1,128)}', space=vmem, size = 0x9000, scoped, tag = 'internal scratch']
  #allocation2 [shape = 'f32[1,1]{1,0:T(1,128)S(6)}', space=smem, size = 0x200, scoped, tag = 'scoped memory for tpu_custom_call.1']
  %s0 = inlined_call_operand.hbm [shape: f32[8,10], index: 0, kind: input, shape index: {}]
  %s1 = inlined_call_operand.vmem [shape: f32[1,10], index: 1, kind: input, shape index: {}]
  %s2 = inlined_call_operand.<no memory space> [shape: f32[1,1], index: 2, kind: input, shape index: {}]
  %s3 = inlined_call_operand.vmem [shape: f32[8,1], index: 3, kind: output, shape index: {}]
  %s4 = sld [smem:[#allocation0]]
  $region26: #{tpu_custom_call.1} parent=0
    _
  %s6 = ssub.s32 1, %s4
  %s7 = scalar_select 0, %s6, %s4
  %8 = sst [smem:[#allocation2]] %s2
  $region1: #{tpu_custom_call.1} parent=0
    #allocation3 [shape = 'u8[4096]{0}', space=vmem, size = 0x1000, scoped, tag = 'input window, operand 0, single buffered']
    #allocation4 [shape = 's32[1]{0}', space=sflag, size = 0x4, scoped, tag = 'scoped memory for tpu_custom_call.1']
    %9 = vsyncpa [#allocation4], 0
    // Predicated region
    $region2: #{tpu_custom_call.1} parent=1 // pred_check
      _
    $region3: #{tpu_custom_call.1} parent=1 // pred_check_branch
      %11 = sbr.rel (0) target = $region5
    $region4: #{tpu_custom_call.1} parent=1 // pred_region
      %13 = vsyncadd [#allocation4], 0
      %s15 = sshll.u32 %s0, 4
      %s16 = int_to_ptr.hbm [resolvable:$true] %s15
      %s17 = sshll.u32 [#allocation3], 4
      %s18 = int_to_ptr.vmem [resolvable:$true] %s17
      %20 = dma.hbm_to_vmem [thread:$0]  %s16, 128, %s18, [#allocation4]
    $region5: #{tpu_custom_call.1} parent=1 // pred_fallthru
      _
    // Predicated region
    $region6: #{tpu_custom_call.1} parent=1 // pred_check
      _
    $region7: #{tpu_custom_call.1} parent=1 // pred_check_branch
      %22 = sbr.rel (0) target = $region9
    $region8: #{tpu_custom_call.1} parent=1 // pred_region
      _
    $region9: #{tpu_custom_call.1} parent=1 // pred_fallthru
      _
    // Predicated region
    $region10: #{tpu_custom_call.1} parent=1 // pred_check
      _
    $region11: #{tpu_custom_call.1} parent=1 // pred_check_branch
      %24 = sbr.rel (0) target = $region13
    $region12: #{tpu_custom_call.1} parent=1 // pred_region
      _
    $region13: #{tpu_custom_call.1} parent=1 // pred_fallthru
      _
    // Predicated region
    $region14: #{tpu_custom_call.1} parent=1 // pred_check
      _
    $region15: #{tpu_custom_call.1} parent=1 // pred_check_branch
      %26 = sbr.rel (0) target = $region17
    $region16: #{tpu_custom_call.1} parent=1 // pred_region
      %28 = dma.done [#allocation4], 128
    $region17: #{tpu_custom_call.1} parent=1 // pred_fallthru
      _
    %v29 = vld [vmem:[#allocation3] sm:$0xff]
    %v30 = vld [vmem:[%s1] sm:$0x1]
    %v32 = vperm.slane %v30, 0
    %v34 = vmul.f32 %v29, %v32
    %vm35 = vcmask 80896
    %v36 = vsel %vm35, %v34, 0.0
    %37 = vadd.xlane.f32.xlu0 %v36
    %v38 = vpop.xlane.xlu0 %37
    %s39 = sld [smem:[#allocation2]]
    %v40 = vstv %s39
    %v41 = vadd.f32 %v38, %v40
    %vm42 = vcmask 7168
    %43 = vst.msk [vmem:[%s3] sm:$0xff] %vm42, %v41
    // Predicated region
    $region18: #{tpu_custom_call.1} parent=1 // pred_check
      _
    $region19: #{tpu_custom_call.1} parent=1 // pred_check_branch
      %45 = sbr.rel (0) target = $region21
    $region20: #{tpu_custom_call.1} parent=1 // pred_region
      _
    $region21: #{tpu_custom_call.1} parent=1 // pred_fallthru
      _
    // Predicated region
    $region22: #{tpu_custom_call.1} parent=1 // pred_check
      _
    $region23: #{tpu_custom_call.1} parent=1 // pred_check_branch
      %47 = sbr.rel (0) target = $region25
    $region24: #{tpu_custom_call.1} parent=1 // pred_region
      _
    $region25: #{tpu_custom_call.1} parent=1 // pred_fallthru
      _
    %48 = vsyncpa [#allocation4], 1

</llo_original>
